<compile_context>
chip_gen: v5e
topology: v5e:2x2
jax: 0.10.0
libtpu: 0.0.40
codegen_flags: <defaults>
</compile_context>

<pallas_src>
import functools

import jax
import jax.numpy as jnp
from jax import lax
from jax.experimental import pallas as pl
from jax.experimental.pallas import tpu as pltpu


def _round_up(x, m):
    return ((x + m - 1) // m) * m


def _layernorm_kernel(x_ref, g_ref, b_ref, o_ref, *, eps, inv_m):
    # x_ref: (tile_t, Mp)   g_ref / b_ref: (1, Mp)   o_ref: (tile_t, Mp)
    x = x_ref[...].astype(jnp.float32)
    # One-pass statistics: both reductions run over the same pass of x.
    s1 = jnp.sum(x, axis=-1, keepdims=True)
    s2 = jnp.sum(x * x, axis=-1, keepdims=True)
    mean = s1 * inv_m
    var = jnp.maximum(s2 * inv_m - mean * mean, 0.0)   # biased var (PyTorch LayerNorm)
    inv = lax.rsqrt(var + eps)                          # EUP rsqrt (free slot vs VALU)
    y = (x - mean) * inv
    y = y * g_ref[...].astype(jnp.float32) + b_ref[...].astype(jnp.float32)
    o_ref[...] = y.astype(o_ref.dtype)


def layernorm_2d(x2d, gamma, beta, *, eps=1e-5, target_tile_bytes=4 << 20):
    """LayerNorm over the last dim of x2d[T, M]; gamma/beta have shape [M]."""
    T, M = x2d.shape
    dtype = x2d.dtype
    itemsize = jnp.dtype(dtype).itemsize
    sublane = max(8, 32 // itemsize)        # f32: 8, bf16: 16, int8/fp8: 32

    # Lane-dense last dim: zero-pad M to a 128 multiple (padded lanes add 0 to
    # the sums; we divide by the true M and slice them off afterwards).
    Mp = _round_up(M, 128)
    if Mp != M:
        x_in = jnp.pad(x2d, ((0, 0), (0, Mp - M)))
        g_in = jnp.pad(gamma, (0, Mp - M)).reshape(1, Mp)
        b_in = jnp.pad(beta, (0, Mp - M)).reshape(1, Mp)
    else:
        x_in = x2d
        g_in = gamma.reshape(1, Mp)
        b_in = beta.reshape(1, Mp)

    # Per-chip VMEM capacity (v7x: 64 MiB, v5e/v6e: 128 MiB).
    try:
        vmem_cap = int(pltpu.get_tpu_info().vmem_capacity_bytes)
    except Exception:  # conservative fallback
        vmem_cap = 64 << 20
    vmem_budget = max(32 << 20, int(0.6 * vmem_cap))

    # Per-element VMEM cost: double-buffered in + out blocks (4*itemsize) plus
    # ~3 live (tile, Mp) f32 temporaries inside the kernel (~12 bytes).
    per_elem = 4 * itemsize + 12
    rows = max(sublane, target_tile_bytes // (Mp * itemsize))       # size by bytes
    rows = min(rows, max(sublane, vmem_budget // (Mp * per_elem)))  # VMEM cap
    if T > sublane:  # guarantee >= 2 grid blocks so both v7x TCs get work
        rows = min(rows, max(sublane, _round_up(pl.cdiv(T, 2), sublane)))
    rows = max(sublane, (rows // sublane) * sublane)
    rows = min(rows, _round_up(T, sublane))
    rows = int(rows)

    # No row padding: partial final block's OOB rows are garbage but their
    # stores are masked; rows are independent so valid rows are unaffected.
    n_blocks = pl.cdiv(T, rows)

    tile_usage = rows * Mp * per_elem + 2 * Mp * 4 + (2 << 20)
    vmem_limit = int(min(max(tile_usage, 32 << 20),
                         max(32 << 20, vmem_cap - (4 << 20))))

    out = pl.pallas_call(
        functools.partial(_layernorm_kernel, eps=float(eps), inv_m=1.0 / float(M)),
        out_shape=jax.ShapeDtypeStruct((T, Mp), dtype),
        grid_spec=pltpu.PrefetchScalarGridSpec(
            num_scalar_prefetch=0,
            grid=(n_blocks,),
            in_specs=[
                pl.BlockSpec((rows, Mp), lambda i: (i, 0)),   # x row tile
                pl.BlockSpec((1, Mp), lambda i: (0, 0)),      # gamma (resident)
                pl.BlockSpec((1, Mp), lambda i: (0, 0)),      # beta  (resident)
            ],
            out_specs=pl.BlockSpec((rows, Mp), lambda i: (i, 0)),
        ),
        compiler_params=pltpu.CompilerParams(
            dimension_semantics=("parallel",),
            vmem_limit_bytes=vmem_limit,
        ),
    )(x_in, g_in, b_in)
    return out if Mp == M else out[:, :M]


class PreNormPallas:
    """Mirror of PyTorch `PreNorm(dim, fn)`: fn( LayerNorm(dim) over flattened H*W*D )."""

    def __init__(self, dim, key, fn=None, eps=1e-5):
        kg, kb = jax.random.split(key)
        # Deterministic synthetic affine params (PyTorch default is ones/zeros;
        # random values make the correctness check nontrivial).
        self.gamma = 1.0 + 0.1 * jax.random.normal(kg, (dim,), jnp.float32)
        self.beta = 0.1 * jax.random.normal(kb, (dim,), jnp.float32)
        self.eps = eps
        self.dim = dim
        # TODO(synk): `fn` is an arbitrary wrapped sub-module (attention/MLP) not specified by
        # the PreNorm spec; it is applied as a plain callable outside the kernel (identity here).
        self.fn = fn if fn is not None else (lambda y: y)

    def __call__(self, x):
        B, C, H, W, D = x.shape
        M = H * W * D
        assert M == self.dim, "LayerNorm dim must equal height*width*depth"
        x2 = x.reshape(B * C, M)                              # glue reshape (view in PyTorch)
        y2 = layernorm_2d(x2, self.gamma, self.beta, eps=self.eps)
        y = y2.reshape(B, C, H, W, D)
        return self.fn(y)


if __name__ == "__main__":
    key = jax.random.PRNGKey(0)
    k_x, k_p = jax.random.split(key)

    B, C, H, W, Dp = 2, 4, 4, 4, 8          # dim = H*W*Dp = 128  (lane-dense last dim)
    x = jax.random.normal(k_x, (B, C, H, W, Dp), jnp.float32)

    module = PreNormPallas(H * W * Dp, k_p)
    out = jax.block_until_ready(module(x))

    # Pure-JAX reference of PreNorm.forward (fn = identity).
    xr = x.reshape(B * C, H * W * Dp).astype(jnp.float32)
    mean = jnp.mean(xr, axis=-1, keepdims=True)
    var = jnp.mean((xr - mean) ** 2, axis=-1, keepdims=True)
    ref = ((xr - mean) / jnp.sqrt(var + module.eps)) * module.gamma + module.beta
    ref = ref.reshape(B, C, H, W, Dp)

    assert out.shape == x.shape and out.dtype == x.dtype
    assert jnp.allclose(out, ref, atol=1e-4, rtol=1e-4), float(jnp.max(jnp.abs(out - ref)))

    print("KERNEL_OK")
</pallas_src>

<mosaic_0001>
module attributes {stable_mosaic.version = 11 : i64} {
  func.func @_layernorm_kernel(%arg0: i32, %arg1: memref<8x128xf32, #tpu.memory_space<vmem>>, %arg2: memref<1x128xf32, #tpu.memory_space<vmem>>, %arg3: memref<1x128xf32, #tpu.memory_space<vmem>>, %arg4: memref<8x128xf32, #tpu.memory_space<vmem>>) attributes {dimension_semantics = [#tpu.dimension_semantics<parallel>], iteration_bounds = array<i64: 1>, scalar_prefetch = 0 : i64, scratch_operands = 0 : i64, tpu.core_type = #tpu.core_type<tc>, window_params = [{transform_indices = @transform_0, window_bounds = array<i64: 8, 128>}, {pipeline_mode = #tpu.pipeline_mode<synchronous>, transform_indices = @transform_1, window_bounds = array<i64: 1, 128>}, {pipeline_mode = #tpu.pipeline_mode<synchronous>, transform_indices = @transform_2, window_bounds = array<i64: 1, 128>}, {transform_indices = @transform_3, window_bounds = array<i64: 8, 128>}]} {
    %c0 = arith.constant 0 : index
    %c0_0 = arith.constant 0 : index
    %0 = vector.load %arg1[%c0, %c0_0] : memref<8x128xf32, #tpu.memory_space<vmem>>, vector<8x128xf32>
    %cst = arith.constant dense<0.000000e+00> : vector<8xf32>
    %1 = vector.multi_reduction <add>, %0, %cst [1] : vector<8x128xf32> to vector<8xf32>
    %2 = vector.shape_cast %1 : vector<8xf32> to vector<8x1xf32>
    %3 = arith.mulf %0, %0 : vector<8x128xf32>
    %cst_1 = arith.constant dense<0.000000e+00> : vector<8xf32>
    %4 = vector.multi_reduction <add>, %3, %cst_1 [1] : vector<8x128xf32> to vector<8xf32>
    %5 = vector.shape_cast %4 : vector<8xf32> to vector<8x1xf32>
    %cst_2 = arith.constant 7.812500e-03 : f32
    %6 = vector.broadcast %cst_2 : f32 to vector<8x1xf32>
    %7 = arith.mulf %2, %6 : vector<8x1xf32>
    %cst_3 = arith.constant 7.812500e-03 : f32
    %8 = vector.broadcast %cst_3 : f32 to vector<8x1xf32>
    %9 = arith.mulf %5, %8 : vector<8x1xf32>
    %10 = arith.mulf %7, %7 : vector<8x1xf32>
    %11 = arith.subf %9, %10 : vector<8x1xf32>
    %cst_4 = arith.constant 0.000000e+00 : f32
    %12 = vector.broadcast %cst_4 : f32 to vector<8x1xf32>
    %13 = arith.maximumf %11, %12 : vector<8x1xf32>
    %cst_5 = arith.constant 9.99999974E-6 : f32
    %14 = vector.broadcast %cst_5 : f32 to vector<8x1xf32>
    %15 = arith.addf %13, %14 : vector<8x1xf32>
    %16 = math.rsqrt %15 : vector<8x1xf32>
    %17 = vector.broadcast %7 : vector<8x1xf32> to vector<8x128xf32>
    %18 = arith.subf %0, %17 : vector<8x128xf32>
    %19 = vector.broadcast %16 : vector<8x1xf32> to vector<8x128xf32>
    %20 = arith.mulf %18, %19 : vector<8x128xf32>
    %c0_6 = arith.constant 0 : index
    %c0_7 = arith.constant 0 : index
    %21 = vector.load %arg2[%c0_6, %c0_7] : memref<1x128xf32, #tpu.memory_space<vmem>>, vector<1x128xf32>
    %22 = vector.broadcast %21 : vector<1x128xf32> to vector<8x128xf32>
    %23 = arith.mulf %20, %22 : vector<8x128xf32>
    %c0_8 = arith.constant 0 : index
    %c0_9 = arith.constant 0 : index
    %24 = vector.load %arg3[%c0_8, %c0_9] : memref<1x128xf32, #tpu.memory_space<vmem>>, vector<1x128xf32>
    %25 = vector.broadcast %24 : vector<1x128xf32> to vector<8x128xf32>
    %26 = arith.addf %23, %25 : vector<8x128xf32>
    %c0_10 = arith.constant 0 : index
    %c0_11 = arith.constant 0 : index
    %27 = vector.load %arg4[%c0_10, %c0_11] : memref<8x128xf32, #tpu.memory_space<vmem>>, vector<8x128xf32>
    tpu.vector_store %arg4[%c0_10, %c0_11], %26 {strides = array<i32>} : memref<8x128xf32, #tpu.memory_space<vmem>>, vector<8x128xf32>,
    return
  }
  func.func @transform_0(%arg0: i32) -> (i32, i32) {
    %c0_i32 = arith.constant 0 : i32
    %c0_i32_0 = arith.constant 0 : i32
    return %arg0, %c0_i32 : i32, i32
  }
  func.func @transform_1(%arg0: i32) -> (i32, i32) {
    %c0_i32 = arith.constant 0 : i32
    %c0_i32_0 = arith.constant 0 : i32
    %c0_i32_1 = arith.constant 0 : i32
    return %c0_i32, %c0_i32_0 : i32, i32
  }
  func.func @transform_2(%arg0: i32) -> (i32, i32) {
    %c0_i32 = arith.constant 0 : i32
    %c0_i32_0 = arith.constant 0 : i32
    %c0_i32_1 = arith.constant 0 : i32
    return %c0_i32, %c0_i32_0 : i32, i32
  }
  func.func @transform_3(%arg0: i32) -> (i32, i32) {
    %c0_i32 = arith.constant 0 : i32
    %c0_i32_0 = arith.constant 0 : i32
    return %arg0, %c0_i32 : i32, i32
  }
}

</mosaic_0001>

<llo_original>
// kernel: tpu_custom_call.1
$region0: #{tpu_custom_call.1}
  #allocation0 [shape = 'u32[]', space=smem, size = 0x4, offset = 0x4, fixed_abs, tag = 'smem constant byte address 0x4 - core index']
  #allocation1 [shape = 'u32[72,128]{1,0:T(1,128)}', space=vmem, size = 0x9000, scoped, tag = 'internal scratch']
  %s0 = inlined_call_operand.hbm [shape: f32[8,128], index: 0, kind: input, shape index: {}]
  %s1 = inlined_call_operand.hbm [shape: f32[1,128], index: 1, kind: input, shape index: {}]
  %s2 = inlined_call_operand.vmem [shape: f32[1,128], index: 2, kind: input, shape index: {}]
  %s3 = inlined_call_operand.hbm [shape: f32[8,128], index: 3, kind: output, shape index: {}]
  %s4 = sld [smem:[#allocation0]]
  $region30: #{tpu_custom_call.1} parent=0
    _
  %s6 = ssub.s32 1, %s4
  %s7 = scalar_select 0, %s6, %s4
  $region1: #{tpu_custom_call.1} parent=0
    #allocation2 [shape = 'u8[4096]{0}', space=vmem, size = 0x1000, scoped, tag = 'input window, operand 0, single buffered']
    #allocation3 [shape = 's32[1]{0}', space=sflag, size = 0x4, scoped, tag = 'scoped memory for tpu_custom_call.1']
    #allocation4 [shape = 's32[1]{0}', space=sflag, size = 0x4, scoped, tag = 'scoped memory for tpu_custom_call.1']
    #allocation5 [shape = 'u8[512]{0}', space=vmem, size = 0x400, scoped, tag = 'input window, operand 1, single buffered']
    #allocation6 [shape = 's32[1]{0}', space=sflag, size = 0x4, scoped, tag = 'scoped memory for tpu_custom_call.1']
    #allocation7 [shape = 'u8[4096]{0}', space=vmem, size = 0x1000, scoped, tag = 'output window, operand 0, single buffered']
    %8 = vsyncpa [#allocation3], 0
    %9 = vsyncpa [#allocation6], 0
    %10 = vsyncpa [#allocation4], 0
    // Predicated region
    $region2: #{tpu_custom_call.1} parent=1 // pred_check
      _
    $region3: #{tpu_custom_call.1} parent=1 // pred_check_branch
      %12 = sbr.rel (0) target = $region5
    $region4: #{tpu_custom_call.1} parent=1 // pred_region
      %14 = vsyncadd [#allocation3], 0
      %s16 = sshll.u32 %s0, 4
      %s17 = int_to_ptr.hbm [resolvable:$true] %s16
      %s18 = sshll.u32 [#allocation2], 4
      %s19 = int_to_ptr.vmem [resolvable:$true] %s18
      %21 = dma.hbm_to_vmem [thread:$0]  %s17, 128, %s19, [#allocation3]
    $region5: #{tpu_custom_call.1} parent=1 // pred_fallthru
      _
    // Predicated region
    $region6: #{tpu_custom_call.1} parent=1 // pred_check
      _
    $region7: #{tpu_custom_call.1} parent=1 // pred_check_branch
      %23 = sbr.rel (0) target = $region9
    $region8: #{tpu_custom_call.1} parent=1 // pred_region
      %25 = vsyncadd [#allocation6], 0
      %s27 = sshll.u32 %s1, 4
      %s28 = int_to_ptr.hbm [resolvable:$true] %s27
      %s29 = sshll.u32 [#allocation5], 4
      %s30 = int_to_ptr.vmem [resolvable:$true] %s29
      %32 = dma.hbm_to_vmem [thread:$0]  %s28, 16, %s30, [#allocation6]
    $region9: #{tpu_custom_call.1} parent=1 // pred_fallthru
      _
    // Predicated region
    $region10: #{tpu_custom_call.1} parent=1 // pred_check
      _
    $region11: #{tpu_custom_call.1} parent=1 // pred_check_branch
      %34 = sbr.rel (0) target = $region13
    $region12: #{tpu_custom_call.1} parent=1 // pred_region
      _
    $region13: #{tpu_custom_call.1} parent=1 // pred_fallthru
      _
    // Predicated region
    $region14: #{tpu_custom_call.1} parent=1 // pred_check
      _
    $region15: #{tpu_custom_call.1} parent=1 // pred_check_branch
      %36 = sbr.rel (0) target = $region17
    $region16: #{tpu_custom_call.1} parent=1 // pred_region
      %38 = dma.done [#allocation3], 128
    $region17: #{tpu_custom_call.1} parent=1 // pred_fallthru
      _
    // Predicated region
    $region18: #{tpu_custom_call.1} parent=1 // pred_check
      _
    $region19: #{tpu_custom_call.1} parent=1 // pred_check_branch
      %40 = sbr.rel (0) target = $region21
    $region20: #{tpu_custom_call.1} parent=1 // pred_region
      %42 = dma.done [#allocation6], 16
    $region21: #{tpu_custom_call.1} parent=1 // pred_fallthru
      _
    %v43 = vld [vmem:[#allocation2] sm:$0xff]
    %44 = vadd.xlane.f32.xlu0 %v43
    %v45 = vpop.xlane.xlu0 %44
    %v46 = vmul.f32 %v43, %v43
    %47 = vadd.xlane.f32.xlu0 %v46
    %v48 = vpop.xlane.xlu0 %47
    %v49 = vmul.f32 %v45, 0.0078125
    %v50 = vmul.f32 %v48, 0.0078125
    %v51 = vmul.f32 %v49, %v49
    %v52 = vsub.f32 %v50, %v51
    %v53 = vmax.f32 %v52, 0.0
    %v54 = vadd.f32 %v53, 1e-05
    %v55 = vrsqrt.pop %v54
    %v56 = vmul.f32 %v55, %v54
    %v57 = vmul.f32 %v56, %v55
    %v58 = vmul.f32 0.5, %v57
    %v59 = vsub.f32 1.5, %v58
    %v60 = vmul.f32 %v55, %v59
    %vm61 = vweird.f32 %v54
    %vm62 = vweird.f32 %v55
    %vm63 = vmor %vm61, %vm62
    %v64 = vsel %vm63, %v55, %v60
    %v65 = vsub.f32 %v43, %v49
    %v66 = vmul.f32 %v65, %v64
    %v67 = vld [vmem:[#allocation5] sm:$0x1]
    %v69 = vperm.slane %v67, 0
    %v71 = vmul.f32 %v66, %v69
    %v72 = vld [vmem:[%s2] sm:$0x1]
    %v74 = vperm.slane %v72, 0
    %v76 = vadd.f32 %v71, %v74
    %77 = vst [vmem:[#allocation7] sm:$0xff] %v76
    // Predicated region
    $region22: #{tpu_custom_call.1} parent=1 // pred_check
      _
    $region23: #{tpu_custom_call.1} parent=1 // pred_check_branch
      %79 = sbr.rel (0) target = $region25
    $region24: #{tpu_custom_call.1} parent=1 // pred_region
      %81 = vsyncadd [#allocation4], 0
      %s83 = sshll.u32 [#allocation7], 4
      %s84 = int_to_ptr.vmem [resolvable:$true] %s83
      %s85 = sshll.u32 %s3, 4
      %s86 = int_to_ptr.hbm [resolvable:$true] %s85
      %88 = dma.vmem_to_hbm [thread:$0]  %s84, 128, %s86, [#allocation4]
    $region25: #{tpu_custom_call.1} parent=1 // pred_fallthru
      _
    // Predicated region
    $region26: #{tpu_custom_call.1} parent=1 // pred_check
      _
    $region27: #{tpu_custom_call.1} parent=1 // pred_check_branch
      %90 = sbr.rel (0) target = $region29
    $region28: #{tpu_custom_call.1} parent=1 // pred_region
      %92 = dma.done [#allocation4], 128
    $region29: #{tpu_custom_call.1} parent=1 // pred_fallthru
      _
    %93 = vsyncpa [#allocation3], 1
    %94 = vsyncpa [#allocation6], 1
    %95 = vsyncpa [#allocation4], 1

</llo_original>
